<compile_context>
chip_gen: v5e
topology: v5e:2x2
jax: 0.10.0
libtpu: 0.0.40
codegen_flags: <defaults>
</compile_context>

<pallas_src>
import jax
import jax.numpy as jnp
from jax.experimental import pallas as pl
from jax.experimental.pallas import tpu as pltpu

_LANE = 128
_MiB = 1024 * 1024
# Per-block byte budget.  8 MiB/block -> 2 arrays x 2 pipeline buffers ~ 32 MiB
# of VMEM: fits v7x's 64 MiB physical VMEM with headroom, and is in the
# 4-16 MiB sweet spot for v5e/v6e as well.
_BLOCK_BYTE_BUDGET = 8 * _MiB


def _chomp_copy_kernel(x_ref, o_ref):
    # Both blocks are (R_T, L_T) and index the same element window of the
    # output extent, so this is a pure lane-dense VMEM copy.
    o_ref[...] = x_ref[...]


def _round_up(x: int, m: int) -> int:
    return ((x + m - 1) // m) * m


def _choose_tiles(rows: int, L_out: int, itemsize: int) -> tuple[int, int]:
    """Pick (R_T, L_T) from a per-block byte budget."""
    sublane = max(8, 32 // itemsize)            # 8 f32 / 16 bf16 / 32 int8
    L_full = _round_up(L_out, _LANE)

    # Lane tile: full output width when even one sublane-pack of rows fits the
    # budget (grid becomes 1-D over rows, every store full-width except at most
    # the final 128-lane remainder); otherwise the largest 128-multiple that
    # fits the budget.
    if sublane * L_full * itemsize <= _BLOCK_BYTE_BUDGET:
        L_T = L_full
    else:
        L_T = max(
            _LANE,
            (_BLOCK_BYTE_BUDGET // (sublane * itemsize)) // _LANE * _LANE,
        )

    # Row tile: as many sublane-packs as fit the budget, then split the rows
    # evenly so the trailing row block isn't a nearly-empty masked block.
    r_max = max(
        sublane,
        (_BLOCK_BYTE_BUDGET // (L_T * itemsize)) // sublane * sublane,
    )
    n_row_blocks = pl.cdiv(rows, r_max)

    # v7x has 2 TensorCores; keep >= 2 programs on the parallel grid whenever
    # the problem is big enough to be worth sharding across them.
    total_bytes = rows * L_out * itemsize
    if (
        n_row_blocks == 1
        and pl.cdiv(L_out, L_T) == 1
        and rows >= 2 * sublane
        and total_bytes >= _MiB
    ):
        n_row_blocks = 2

    R_T = _round_up(pl.cdiv(rows, n_row_blocks), sublane)
    return R_T, L_T


def chomp1d(x: jax.Array, chomp_size: int) -> jax.Array:
    """Pallas equivalent of Chomp1d(chomp_size).forward(x) for x of shape (N, C, L).

    Note: chomp_size must be in (0, L); chomp_size == 0 is degenerate in the
    PyTorch module (x[:, :, :-0] is empty) and is excluded here.
    """
    N, C, L = x.shape
    assert 0 < chomp_size < L, "chomp_size must be in (0, L)"
    L_out = L - chomp_size

    # Flatten (N, C) -> rows: free layout plumbing on contiguous NCL data.
    rows = N * C
    x2 = x.reshape(rows, L)
    itemsize = jnp.dtype(x.dtype).itemsize

    R_T, L_T = _choose_tiles(rows, L_out, itemsize)
    grid = (pl.cdiv(rows, R_T), pl.cdiv(L_out, L_T))

    # 2 arrays x 2 pipeline buffers + headroom; never below the common scoped
    # default, capped so it stays comfortably inside v7x's 64 MiB physical VMEM.
    block_bytes = R_T * L_T * itemsize
    vmem_limit = min(48 * _MiB, max(32 * _MiB, 4 * block_bytes + 8 * _MiB))

    out2 = pl.pallas_call(
        _chomp_copy_kernel,
        out_shape=jax.ShapeDtypeStruct((rows, L_out), x.dtype),
        grid=grid,
        # Input tiled over the OUTPUT window: only the first L_out columns
        # (plus at most one ragged boundary tile) are ever read from HBM.
        in_specs=[pl.BlockSpec((R_T, L_T), lambda r, l: (r, l))],
        out_specs=pl.BlockSpec((R_T, L_T), lambda r, l: (r, l)),
        compiler_params=pltpu.CompilerParams(
            dimension_semantics=("parallel", "parallel"),
            vmem_limit_bytes=vmem_limit,
        ),
        cost_estimate=pl.CostEstimate(
            flops=0,
            transcendentals=0,
            bytes_accessed=2 * rows * L_out * itemsize,
        ),
    )(x2)

    return out2.reshape(N, C, L_out)


if __name__ == "__main__":
    key = jax.random.PRNGKey(0)

    # Primary small test matching the module's expected usage.
    N, C, L = 2, 4, 16
    chomp_size = 3
    x = jax.random.normal(key, (N, C, L), dtype=jnp.float32)

    out = chomp1d(x, chomp_size)
    out = jax.block_until_ready(out)

    ref = x[:, :, :-chomp_size]
    assert out.shape == (N, C, L - chomp_size), out.shape
    assert out.dtype == x.dtype
    assert jnp.array_equal(out, ref), "Pallas Chomp1d mismatch vs reference"

    # Sanity check: long L with a ragged 128-lane remainder, full-width L tile.
    N2, C2, L2, ch2 = 2, 4, 1200, 100
    x2 = jax.random.normal(jax.random.PRNGKey(0), (N2, C2, L2), dtype=jnp.float32)
    out2 = jax.block_until_ready(chomp1d(x2, ch2))
    assert jnp.array_equal(out2, x2[:, :, :-ch2]), "ragged-lane mismatch"

    # Sanity check: big enough to trigger the >=2 row-block (dual-TC) split.
    N3, C3, L3, ch3 = 4, 8, 10000, 200
    x3 = jax.random.normal(jax.random.PRNGKey(0), (N3, C3, L3), dtype=jnp.float32)
    out3 = jax.block_until_ready(chomp1d(x3, ch3))
    assert jnp.array_equal(out3, x3[:, :, :-ch3]), "row-split mismatch"

    # Sanity check: bf16 exercises the 16-sublane pack path.
    N4, C4, L4, ch4 = 2, 4, 300, 50
    x4 = jax.random.normal(jax.random.PRNGKey(0), (N4, C4, L4), dtype=jnp.bfloat16)
    out4 = jax.block_until_ready(chomp1d(x4, ch4))
    assert jnp.array_equal(out4, x4[:, :, :-ch4]), "bf16 mismatch"

    print("KERNEL_OK")
</pallas_src>

<mosaic_0001>
module attributes {stable_mosaic.version = 11 : i64} {
  func.func @_chomp_copy_kernel(%arg0: i32, %arg1: i32, %arg2: memref<8x128xf32, #tpu.memory_space<vmem>>, %arg3: memref<8x128xf32, #tpu.memory_space<vmem>>) attributes {dimension_semantics = [#tpu.dimension_semantics<parallel>, #tpu.dimension_semantics<parallel>], iteration_bounds = array<i64: 1, 1>, scalar_prefetch = 0 : i64, scratch_operands = 0 : i64, tpu.core_type = #tpu.core_type<tc>, window_params = [{transform_indices = @transform_0, window_bounds = array<i64: 8, 128>}, {transform_indices = @transform_1, window_bounds = array<i64: 8, 128>}]} {
    %c0 = arith.constant 0 : index
    %c0_0 = arith.constant 0 : index
    %0 = vector.load %arg2[%c0, %c0_0] : memref<8x128xf32, #tpu.memory_space<vmem>>, vector<8x128xf32>
    %c0_1 = arith.constant 0 : index
    %c0_2 = arith.constant 0 : index
    %1 = vector.load %arg3[%c0_1, %c0_2] : memref<8x128xf32, #tpu.memory_space<vmem>>, vector<8x128xf32>
    tpu.vector_store %arg3[%c0_1, %c0_2], %0 {strides = array<i32>} : memref<8x128xf32, #tpu.memory_space<vmem>>, vector<8x128xf32>,
    return
  }
  func.func @transform_0(%arg0: i32, %arg1: i32) -> (i32, i32) {
    %c0_i32 = arith.constant 0 : i32
    return %arg0, %arg1 : i32, i32
  }
  func.func @transform_1(%arg0: i32, %arg1: i32) -> (i32, i32) {
    %c0_i32 = arith.constant 0 : i32
    return %arg0, %arg1 : i32, i32
  }
}

</mosaic_0001>

<llo_original>
// kernel: tpu_custom_call.1
$region0: #{tpu_custom_call.1}
  #allocation0 [shape = 'u32[]', space=smem, size = 0x4, offset = 0x4, fixed_abs, tag = 'smem constant byte address 0x4 - core index']
  #allocation1 [shape = 'u32[72,128]{1,0:T(1,128)}', space=vmem, size = 0x9000, scoped, tag = 'internal scratch']
  %s0 = inlined_call_operand.hbm [shape: f32[8,16], index: 0, kind: input, shape index: {}]
  %s1 = inlined_call_operand.hbm [shape: f32[8,13], index: 1, kind: output, shape index: {}]
  %s2 = sld [smem:[#allocation0]]
  $region18: #{tpu_custom_call.1} parent=0
    _
  %s4 = ssub.s32 1, %s2
  %s5 = scalar_select 0, %s4, %s2
  $region1: #{tpu_custom_call.1} parent=0
    #allocation2 [shape = 'u8[4096]{0}', space=vmem, size = 0x1000, scoped, tag = 'input window, operand 0, single buffered']
    #allocation3 [shape = 's32[1]{0}', space=sflag, size = 0x4, scoped, tag = 'scoped memory for tpu_custom_call.1']
    #allocation4 [shape = 's32[1]{0}', space=sflag, size = 0x4, scoped, tag = 'scoped memory for tpu_custom_call.1']
    #allocation5 [shape = 'u8[4096]{0}', space=vmem, size = 0x1000, scoped, tag = 'output window, operand 0, single buffered']
    %6 = vsyncpa [#allocation3], 0
    %7 = vsyncpa [#allocation4], 0
    // Predicated region
    $region2: #{tpu_custom_call.1} parent=1 // pred_check
      _
    $region3: #{tpu_custom_call.1} parent=1 // pred_check_branch
      %9 = sbr.rel (0) target = $region5
    $region4: #{tpu_custom_call.1} parent=1 // pred_region
      %11 = vsyncadd [#allocation3], 0
      %s13 = sshll.u32 %s0, 4
      %s14 = int_to_ptr.hbm [resolvable:$true] %s13
      %s15 = sshll.u32 [#allocation2], 4
      %s16 = int_to_ptr.vmem [resolvable:$true] %s15
      %18 = dma.hbm_to_vmem [thread:$0]  %s14, 128, %s16, [#allocation3]
    $region5: #{tpu_custom_call.1} parent=1 // pred_fallthru
      _
    // Predicated region
    $region6: #{tpu_custom_call.1} parent=1 // pred_check
      _
    $region7: #{tpu_custom_call.1} parent=1 // pred_check_branch
      %20 = sbr.rel (0) target = $region9
    $region8: #{tpu_custom_call.1} parent=1 // pred_region
      %22 = dma.done [#allocation3], 128
    $region9: #{tpu_custom_call.1} parent=1 // pred_fallthru
      _
    %v23 = vld [vmem:[#allocation2] sm:$0xff]
    %24 = vst [vmem:[#allocation5] sm:$0xff] %v23
    // Predicated region
    $region10: #{tpu_custom_call.1} parent=1 // pred_check
      _
    $region11: #{tpu_custom_call.1} parent=1 // pred_check_branch
      %26 = sbr.rel (0) target = $region13
    $region12: #{tpu_custom_call.1} parent=1 // pred_region
      %28 = vsyncadd [#allocation4], 0
      %s30 = sshll.u32 [#allocation5], 4
      %s31 = int_to_ptr.vmem [resolvable:$true] %s30
      %s32 = sshll.u32 %s1, 4
      %s33 = int_to_ptr.hbm [resolvable:$true] %s32
      %35 = dma.vmem_to_hbm [thread:$0]  %s31, 128, %s33, [#allocation4]
    $region13: #{tpu_custom_call.1} parent=1 // pred_fallthru
      _
    // Predicated region
    $region14: #{tpu_custom_call.1} parent=1 // pred_check
      _
    $region15: #{tpu_custom_call.1} parent=1 // pred_check_branch
      %37 = sbr.rel (0) target = $region17
    $region16: #{tpu_custom_call.1} parent=1 // pred_region
      %39 = dma.done [#allocation4], 128
    $region17: #{tpu_custom_call.1} parent=1 // pred_fallthru
      _
    %40 = vsyncpa [#allocation3], 1
    %41 = vsyncpa [#allocation4], 1

</llo_original>
